<compile_context>
chip_gen: v6e
topology: v6e:2x2x1
jax: 0.10.0
libtpu: 0.0.40
codegen_flags: <defaults>
</compile_context>

<pallas_src>
import jax
import jax.numpy as jnp
from jax.experimental import pallas as pl
from jax.experimental.pallas import tpu as pltpu


HIDDEN = 100          # logical hidden size (matches the PyTorch module)
HIDDEN_PAD = 128      # lane-aligned hidden size used inside the kernel
N_QUANTILES = 3


def _round_up(x, m):
    return (x + m - 1) // m * m


def _qr_kernel(x_ref, w1_ref, b1_ref, w2_ref, b2_ref, wh_ref, bh_ref, out_ref):
    # x_ref: (TB, F) bf16; weights bf16; biases f32; out_ref: (TB, 3) f32
    x = x_ref[...]

    # X = relu(nn1(inputs))
    h1 = jnp.dot(x, w1_ref[...], preferred_element_type=jnp.float32) + b1_ref[...]
    h1 = jnp.maximum(h1, 0.0).astype(jnp.bfloat16)

    # X = relu(nn2(X))
    h2 = jnp.dot(h1, w2_ref[...], preferred_element_type=jnp.float32) + b2_ref[...]
    h2 = jnp.maximum(h2, 0.0).astype(jnp.bfloat16)

    # Fused heads: [nn3_1 | nn3_2] in one (128, 6) matmul.
    heads = jnp.dot(h2, wh_ref[...], preferred_element_type=jnp.float32) + bh_ref[...]
    x1 = heads[:, 0:N_QUANTILES]
    x2 = jnp.maximum(heads[:, N_QUANTILES:2 * N_QUANTILES], 0.0)

    # output = X_1 + cumsum(X_2, dim=1)  -- 3-element cumsum on the VPU.
    c0 = x2[:, 0:1]
    c1 = c0 + x2[:, 1:2]
    c2 = c1 + x2[:, 2:3]
    cum = jnp.concatenate([c0, c1, c2], axis=1)

    out_ref[...] = (x1 + cum).astype(out_ref.dtype)


def quantile_regression_forward(x, packed, *, tb=256):
    """x: (B, F) float32. packed: output of pack_params(). Returns (B, 3) float32."""
    B, F = x.shape

    # Batch tile: multiple of 8 (sublane), capped at `tb` (>=128/256 pays on the MXU
    # for production batch sizes; tiny demo batches just round up to 8).
    TB = min(tb, _round_up(B, 8))
    B_pad = _round_up(B, TB)

    x_bf = x.astype(jnp.bfloat16)
    if B_pad != B:
        x_bf = jnp.pad(x_bf, ((0, B_pad - B), (0, 0)))

    grid = (B_pad // TB,)

    out = pl.pallas_call(
        _qr_kernel,
        out_shape=jax.ShapeDtypeStruct((B_pad, N_QUANTILES), jnp.float32),
        grid_spec=pltpu.PrefetchScalarGridSpec(
            num_scalar_prefetch=0,
            grid=grid,
            in_specs=[
                # streamed per grid step
                pl.BlockSpec((TB, F), lambda i: (i, 0)),
                # weights/biases: constant index_map -> VMEM-resident across steps
                pl.BlockSpec((F, HIDDEN_PAD), lambda i: (0, 0)),
                pl.BlockSpec((1, HIDDEN_PAD), lambda i: (0, 0)),
                pl.BlockSpec((HIDDEN_PAD, HIDDEN_PAD), lambda i: (0, 0)),
                pl.BlockSpec((1, HIDDEN_PAD), lambda i: (0, 0)),
                pl.BlockSpec((HIDDEN_PAD, 2 * N_QUANTILES), lambda i: (0, 0)),
                pl.BlockSpec((1, 2 * N_QUANTILES), lambda i: (0, 0)),
            ],
            out_specs=pl.BlockSpec((TB, N_QUANTILES), lambda i: (i, 0)),
        ),
        compiler_params=pltpu.CompilerParams(
            dimension_semantics=("parallel",),   # megacore sharding on v7x; no-op on v5e/v6e
        ),
    )(
        x_bf,
        packed["w1"], packed["b1"],
        packed["w2"], packed["b2"],
        packed["wh"], packed["bh"],
    )
    return out[:B]


# ----------------------------- parameter handling -----------------------------

def _xavier_uniform(key, fan_in, fan_out):
    # torch.nn.init.xavier_uniform_ with gain=1: U(-a, a), a = sqrt(6/(fan_in+fan_out))
    bound = (6.0 / (fan_in + fan_out)) ** 0.5
    # PyTorch stores (out, in); we generate (out, in) and transpose to (in, out)
    # so that y = x @ W + b.
    w = jax.random.uniform(key, (fan_out, fan_in), jnp.float32, -bound, bound)
    return w.T


def init_params(key, input_features):
    """Logical (PyTorch-equivalent) f32 parameters."""
    k1, k2, k3, k4 = jax.random.split(key, 4)
    return {
        "w1": _xavier_uniform(k1, input_features, HIDDEN),
        "b1": jnp.zeros((1, HIDDEN), jnp.float32),
        "w2": _xavier_uniform(k2, HIDDEN, HIDDEN),
        "b2": jnp.zeros((1, HIDDEN), jnp.float32),
        "w31": _xavier_uniform(k3, HIDDEN, N_QUANTILES),
        "b31": jnp.zeros((1, N_QUANTILES), jnp.float32),
        "w32": _xavier_uniform(k4, HIDDEN, N_QUANTILES),
        "b32": jnp.zeros((1, N_QUANTILES), jnp.float32),
    }


def pack_params(params):
    """Pad HIDDEN 100->128, fuse the two heads, cast weights to bf16 (biases stay f32)."""
    F = params["w1"].shape[0]

    w1 = jnp.zeros((F, HIDDEN_PAD), jnp.float32).at[:, :HIDDEN].set(params["w1"])
    b1 = jnp.zeros((1, HIDDEN_PAD), jnp.float32).at[:, :HIDDEN].set(params["b1"])
    w2 = jnp.zeros((HIDDEN_PAD, HIDDEN_PAD), jnp.float32).at[:HIDDEN, :HIDDEN].set(params["w2"])
    b2 = jnp.zeros((1, HIDDEN_PAD), jnp.float32).at[:, :HIDDEN].set(params["b2"])

    wh = jnp.zeros((HIDDEN_PAD, 2 * N_QUANTILES), jnp.float32)
    wh = wh.at[:HIDDEN, :N_QUANTILES].set(params["w31"])
    wh = wh.at[:HIDDEN, N_QUANTILES:].set(params["w32"])
    bh = jnp.concatenate([params["b31"], params["b32"]], axis=1)

    return {
        "w1": w1.astype(jnp.bfloat16), "b1": b1,
        "w2": w2.astype(jnp.bfloat16), "b2": b2,
        "wh": wh.astype(jnp.bfloat16), "bh": bh,
    }


def reference_forward(x, params):
    """Pure-JAX f32 reference matching the PyTorch forward semantics."""
    h1 = jax.nn.relu(x @ params["w1"] + params["b1"])
    h2 = jax.nn.relu(h1 @ params["w2"] + params["b2"])
    x1 = h2 @ params["w31"] + params["b31"]
    x2 = jax.nn.relu(h2 @ params["w32"] + params["b32"])
    return x1 + jnp.cumsum(x2, axis=1)


if __name__ == "__main__":
    # NOTE: the original script has INPUT_FEATURES = len(FE) = 0 (empty feature
    # list placeholder); we pick a small non-degenerate feature count instead.
    INPUT_FEATURES = 8
    BATCH = 8

    key = jax.random.PRNGKey(0)
    key_x, key_p = jax.random.split(key)

    params = init_params(key_p, INPUT_FEATURES)
    packed = pack_params(params)

    # Case 1: tiny demo batch (single grid step).
    x = jax.random.normal(key_x, (BATCH, INPUT_FEATURES), jnp.float32)
    out = jax.block_until_ready(quantile_regression_forward(x, packed))
    ref = reference_forward(x, params)
    assert out.shape == (BATCH, N_QUANTILES)
    # bf16 matmul inputs -> loosen tolerance vs the f32 reference.
    assert jnp.allclose(out, ref, atol=5e-2, rtol=5e-2), "mismatch vs JAX reference (case 1)"

    # Case 2: batch not divisible by the tile -> exercises padding + multi-step grid.
    x2 = jax.random.normal(jax.random.PRNGKey(1), (40, INPUT_FEATURES), jnp.float32)
    out2 = jax.block_until_ready(quantile_regression_forward(x2, packed, tb=16))
    ref2 = reference_forward(x2, params)
    assert out2.shape == (40, N_QUANTILES)
    assert jnp.allclose(out2, ref2, atol=5e-2, rtol=5e-2), "mismatch vs JAX reference (case 2)"

    print("KERNEL_OK")
</pallas_src>

<mosaic_0001>
module attributes {stable_mosaic.version = 11 : i64} {
  func.func @_qr_kernel(%arg0: i32, %arg1: memref<8x8xbf16, #tpu.memory_space<vmem>>, %arg2: memref<8x128xbf16, #tpu.memory_space<vmem>>, %arg3: memref<1x128xf32, #tpu.memory_space<vmem>>, %arg4: memref<128x128xbf16, #tpu.memory_space<vmem>>, %arg5: memref<1x128xf32, #tpu.memory_space<vmem>>, %arg6: memref<128x6xbf16, #tpu.memory_space<vmem>>, %arg7: memref<1x6xf32, #tpu.memory_space<vmem>>, %arg8: memref<8x3xf32, #tpu.memory_space<vmem>>) attributes {dimension_semantics = [#tpu.dimension_semantics<parallel>], iteration_bounds = array<i64: 1>, scalar_prefetch = 0 : i64, scratch_operands = 0 : i64, tpu.core_type = #tpu.core_type<tc>, window_params = [{transform_indices = @transform_0, window_bounds = array<i64: 8, 8>}, {pipeline_mode = #tpu.pipeline_mode<synchronous>, transform_indices = @transform_1, window_bounds = array<i64: 8, 128>}, {pipeline_mode = #tpu.pipeline_mode<synchronous>, transform_indices = @transform_2, window_bounds = array<i64: 1, 128>}, {pipeline_mode = #tpu.pipeline_mode<synchronous>, transform_indices = @transform_3, window_bounds = array<i64: 128, 128>}, {pipeline_mode = #tpu.pipeline_mode<synchronous>, transform_indices = @transform_4, window_bounds = array<i64: 1, 128>}, {pipeline_mode = #tpu.pipeline_mode<synchronous>, transform_indices = @transform_5, window_bounds = array<i64: 128, 6>}, {pipeline_mode = #tpu.pipeline_mode<synchronous>, transform_indices = @transform_6, window_bounds = array<i64: 1, 6>}, {transform_indices = @transform_7, window_bounds = array<i64: 8, 3>}]} {
    %c0 = arith.constant 0 : index
    %c0_0 = arith.constant 0 : index
    %0 = vector.load %arg1[%c0, %c0_0] : memref<8x8xbf16, #tpu.memory_space<vmem>>, vector<8x8xbf16>
    %c0_1 = arith.constant 0 : index
    %c0_2 = arith.constant 0 : index
    %1 = vector.load %arg2[%c0_1, %c0_2] : memref<8x128xbf16, #tpu.memory_space<vmem>>, vector<8x128xbf16>
    %cst = arith.constant dense<0.000000e+00> : vector<8x128xf32>
    %2 = tpu.matmul %0, %1, %cst {dimension_numbers = #tpu.dot_dimension_numbers<[1], [0], [0], [1], [0, 0, 1, 1], [], []>} : vector<8x8xbf16>, vector<8x128xbf16>, vector<8x128xf32> -> vector<8x128xf32>
    %c0_3 = arith.constant 0 : index
    %c0_4 = arith.constant 0 : index
    %3 = vector.load %arg3[%c0_3, %c0_4] : memref<1x128xf32, #tpu.memory_space<vmem>>, vector<1x128xf32>
    %4 = vector.broadcast %3 : vector<1x128xf32> to vector<8x128xf32>
    %5 = arith.addf %2, %4 : vector<8x128xf32>
    %cst_5 = arith.constant 0.000000e+00 : f32
    %6 = vector.broadcast %cst_5 : f32 to vector<8x128xf32>
    %7 = arith.maximumf %5, %6 : vector<8x128xf32>
    %8 = arith.truncf %7 : vector<8x128xf32> to vector<8x128xbf16>
    %c0_6 = arith.constant 0 : index
    %c0_7 = arith.constant 0 : index
    %9 = vector.load %arg4[%c0_6, %c0_7] : memref<128x128xbf16, #tpu.memory_space<vmem>>, vector<128x128xbf16>
    %cst_8 = arith.constant dense<0.000000e+00> : vector<8x128xf32>
    %10 = tpu.matmul %8, %9, %cst_8 {dimension_numbers = #tpu.dot_dimension_numbers<[1], [0], [0], [1], [0, 0, 1, 1], [], []>} : vector<8x128xbf16>, vector<128x128xbf16>, vector<8x128xf32> -> vector<8x128xf32>
    %c0_9 = arith.constant 0 : index
    %c0_10 = arith.constant 0 : index
    %11 = vector.load %arg5[%c0_9, %c0_10] : memref<1x128xf32, #tpu.memory_space<vmem>>, vector<1x128xf32>
    %12 = vector.broadcast %11 : vector<1x128xf32> to vector<8x128xf32>
    %13 = arith.addf %10, %12 : vector<8x128xf32>
    %cst_11 = arith.constant 0.000000e+00 : f32
    %14 = vector.broadcast %cst_11 : f32 to vector<8x128xf32>
    %15 = arith.maximumf %13, %14 : vector<8x128xf32>
    %16 = arith.truncf %15 : vector<8x128xf32> to vector<8x128xbf16>
    %c0_12 = arith.constant 0 : index
    %c0_13 = arith.constant 0 : index
    %17 = vector.load %arg6[%c0_12, %c0_13] : memref<128x6xbf16, #tpu.memory_space<vmem>>, vector<128x6xbf16>
    %cst_14 = arith.constant dense<0.000000e+00> : vector<8x6xf32>
    %18 = tpu.matmul %16, %17, %cst_14 {dimension_numbers = #tpu.dot_dimension_numbers<[1], [0], [0], [1], [0, 0, 1, 1], [], []>} : vector<8x128xbf16>, vector<128x6xbf16>, vector<8x6xf32> -> vector<8x6xf32>
    %c0_15 = arith.constant 0 : index
    %c0_16 = arith.constant 0 : index
    %19 = vector.load %arg7[%c0_15, %c0_16] : memref<1x6xf32, #tpu.memory_space<vmem>>, vector<1x6xf32>
    %20 = vector.broadcast %19 : vector<1x6xf32> to vector<8x6xf32>
    %21 = arith.addf %18, %20 : vector<8x6xf32>
    %22 = vector.extract_strided_slice %21 {offsets = [0, 0], sizes = [8, 3], strides = [1, 1]} : vector<8x6xf32> to vector<8x3xf32>
    %23 = vector.extract_strided_slice %21 {offsets = [0, 3], sizes = [8, 3], strides = [1, 1]} : vector<8x6xf32> to vector<8x3xf32>
    %cst_17 = arith.constant 0.000000e+00 : f32
    %24 = vector.broadcast %cst_17 : f32 to vector<8x3xf32>
    %25 = arith.maximumf %23, %24 : vector<8x3xf32>
    %26 = vector.extract_strided_slice %25 {offsets = [0, 0], sizes = [8, 1], strides = [1, 1]} : vector<8x3xf32> to vector<8x1xf32>
    %27 = vector.extract_strided_slice %25 {offsets = [0, 1], sizes = [8, 1], strides = [1, 1]} : vector<8x3xf32> to vector<8x1xf32>
    %28 = arith.addf %26, %27 : vector<8x1xf32>
    %29 = vector.extract_strided_slice %25 {offsets = [0, 2], sizes = [8, 1], strides = [1, 1]} : vector<8x3xf32> to vector<8x1xf32>
    %30 = arith.addf %28, %29 : vector<8x1xf32>
    %31 = tpu.concatenate %26, %28, %30 in 1 : vector<8x1xf32>, vector<8x1xf32>, vector<8x1xf32> -> vector<8x3xf32>
    %32 = arith.addf %22, %31 : vector<8x3xf32>
    %c0_18 = arith.constant 0 : index
    %c0_19 = arith.constant 0 : index
    %33 = vector.load %arg8[%c0_18, %c0_19] : memref<8x3xf32, #tpu.memory_space<vmem>>, vector<8x3xf32>
    tpu.vector_store %arg8[%c0_18, %c0_19], %32 {strides = array<i32>} : memref<8x3xf32, #tpu.memory_space<vmem>>, vector<8x3xf32>,
    return
  }
  func.func @transform_0(%arg0: i32) -> (i32, i32) {
    %c0_i32 = arith.constant 0 : i32
    %c0_i32_0 = arith.constant 0 : i32
    return %arg0, %c0_i32 : i32, i32
  }
  func.func @transform_1(%arg0: i32) -> (i32, i32) {
    %c0_i32 = arith.constant 0 : i32
    %c0_i32_0 = arith.constant 0 : i32
    %c0_i32_1 = arith.constant 0 : i32
    return %c0_i32, %c0_i32_0 : i32, i32
  }
  func.func @transform_2(%arg0: i32) -> (i32, i32) {
    %c0_i32 = arith.constant 0 : i32
    %c0_i32_0 = arith.constant 0 : i32
    %c0_i32_1 = arith.constant 0 : i32
    return %c0_i32, %c0_i32_0 : i32, i32
  }
  func.func @transform_3(%arg0: i32) -> (i32, i32) {
    %c0_i32 = arith.constant 0 : i32
    %c0_i32_0 = arith.constant 0 : i32
    %c0_i32_1 = arith.constant 0 : i32
    return %c0_i32, %c0_i32_0 : i32, i32
  }
  func.func @transform_4(%arg0: i32) -> (i32, i32) {
    %c0_i32 = arith.constant 0 : i32
    %c0_i32_0 = arith.constant 0 : i32
    %c0_i32_1 = arith.constant 0 : i32
    return %c0_i32, %c0_i32_0 : i32, i32
  }
  func.func @transform_5(%arg0: i32) -> (i32, i32) {
    %c0_i32 = arith.constant 0 : i32
    %c0_i32_0 = arith.constant 0 : i32
    %c0_i32_1 = arith.constant 0 : i32
    return %c0_i32, %c0_i32_0 : i32, i32
  }
  func.func @transform_6(%arg0: i32) -> (i32, i32) {
    %c0_i32 = arith.constant 0 : i32
    %c0_i32_0 = arith.constant 0 : i32
    %c0_i32_1 = arith.constant 0 : i32
    return %c0_i32, %c0_i32_0 : i32, i32
  }
  func.func @transform_7(%arg0: i32) -> (i32, i32) {
    %c0_i32 = arith.constant 0 : i32
    %c0_i32_0 = arith.constant 0 : i32
    return %arg0, %c0_i32 : i32, i32
  }
}

</mosaic_0001>

<llo_original>
// kernel: tpu_custom_call.1
$region0: #{tpu_custom_call.1}
  #allocation0 [shape = 'u32[]', space=smem, size = 0x4, offset = 0x4, fixed_abs, tag = 'smem constant byte address 0x4 - core index']
  #allocation1 [shape = 'u32[144,128]{1,0:T(1,128)}', space=vmem, size = 0x12000, scoped, tag = 'internal scratch']
  %s0 = inlined_call_operand.vmem [shape: bf16[8,8], index: 0, kind: input, shape index: {}]
  %s1 = inlined_call_operand.hbm [shape: bf16[8,128], index: 1, kind: input, shape index: {}]
  %s2 = inlined_call_operand.vmem [shape: f32[1,128], index: 2, kind: input, shape index: {}]
  %s3 = inlined_call_operand.vmem [shape: bf16[128,128], index: 3, kind: input, shape index: {}]
  %s4 = inlined_call_operand.vmem [shape: f32[1,128], index: 4, kind: input, shape index: {}]
  %s5 = inlined_call_operand.vmem [shape: bf16[128,6], index: 5, kind: input, shape index: {}]
  %s6 = inlined_call_operand.vmem [shape: f32[1,6], index: 6, kind: input, shape index: {}]
  %s7 = inlined_call_operand.vmem [shape: f32[8,3], index: 7, kind: output, shape index: {}]
  %s8 = sld [smem:[#allocation0]]
  $region42: #{tpu_custom_call.1} parent=0
    _
  %s10 = ssub.s32 1, %s8
  %s11 = scalar_select 0, %s10, %s8
  $region1: #{tpu_custom_call.1} parent=0
    #allocation2 [shape = 'u8[2048]{0}', space=vmem, size = 0x800, scoped, tag = 'input window, operand 1, single buffered']
    #allocation3 [shape = 's32[1]{0}', space=sflag, size = 0x4, scoped, tag = 'scoped memory for tpu_custom_call.1']
    %12 = vsyncpa [#allocation3], 0
    // Predicated region
    $region2: #{tpu_custom_call.1} parent=1 // pred_check
      _
    $region3: #{tpu_custom_call.1} parent=1 // pred_check_branch
      %14 = sbr.rel (0) target = $region5
    $region4: #{tpu_custom_call.1} parent=1 // pred_region
      _
    $region5: #{tpu_custom_call.1} parent=1 // pred_fallthru
      _
    // Predicated region
    $region6: #{tpu_custom_call.1} parent=1 // pred_check
      _
    $region7: #{tpu_custom_call.1} parent=1 // pred_check_branch
      %16 = sbr.rel (0) target = $region9
    $region8: #{tpu_custom_call.1} parent=1 // pred_region
      %s18 = ssub.s32 64, 64
      %19 = vsyncadd [#allocation3], %s18
      %s21 = sshll.u32 [#allocation2], 4
      %s22 = int_to_ptr.vmem [resolvable:$true] %s21
      %24 = dma.hbm_to_vmem [thread:$0]  %s1, 64, %s22, [#allocation3]
    $region9: #{tpu_custom_call.1} parent=1 // pred_fallthru
      _
    // Predicated region
    $region10: #{tpu_custom_call.1} parent=1 // pred_check
      _
    $region11: #{tpu_custom_call.1} parent=1 // pred_check_branch
      %26 = sbr.rel (0) target = $region13
    $region12: #{tpu_custom_call.1} parent=1 // pred_region
      _
    $region13: #{tpu_custom_call.1} parent=1 // pred_fallthru
      _
    // Predicated region
    $region14: #{tpu_custom_call.1} parent=1 // pred_check
      _
    $region15: #{tpu_custom_call.1} parent=1 // pred_check_branch
      %28 = sbr.rel (0) target = $region17
    $region16: #{tpu_custom_call.1} parent=1 // pred_region
      _
    $region17: #{tpu_custom_call.1} parent=1 // pred_fallthru
      _
    // Predicated region
    $region18: #{tpu_custom_call.1} parent=1 // pred_check
      _
    $region19: #{tpu_custom_call.1} parent=1 // pred_check_branch
      %30 = sbr.rel (0) target = $region21
    $region20: #{tpu_custom_call.1} parent=1 // pred_region
      _
    $region21: #{tpu_custom_call.1} parent=1 // pred_fallthru
      _
    // Predicated region
    $region22: #{tpu_custom_call.1} parent=1 // pred_check
      _
    $region23: #{tpu_custom_call.1} parent=1 // pred_check_branch
      %32 = sbr.rel (0) target = $region25
    $region24: #{tpu_custom_call.1} parent=1 // pred_region
      _
    $region25: #{tpu_custom_call.1} parent=1 // pred_fallthru
      _
    // Predicated region
    $region26: #{tpu_custom_call.1} parent=1 // pred_check
      _
    $region27: #{tpu_custom_call.1} parent=1 // pred_check_branch
      %34 = sbr.rel (0) target = $region29
    $region28: #{tpu_custom_call.1} parent=1 // pred_region
      _
    $region29: #{tpu_custom_call.1} parent=1 // pred_fallthru
      _
    // Predicated region
    $region30: #{tpu_custom_call.1} parent=1 // pred_check
      _
    $region31: #{tpu_custom_call.1} parent=1 // pred_check_branch
      %36 = sbr.rel (0) target = $region33
    $region32: #{tpu_custom_call.1} parent=1 // pred_region
      %37 = dma.done [#allocation3], 64
    $region33: #{tpu_custom_call.1} parent=1 // pred_fallthru
      _
    %v39 = vld [vmem:[%s0] sm:$0xf]
    %v40 = vld [vmem:[#allocation2] sm:$0xf]
    %v41 = vld [vmem:[%s2] sm:$0x1]
    %v43 = vlaneseq
    %v44 = vshrl.u32 %v43, 7
    %v45 = vsub.s32 0, %v44
    %v46 = vrot.slane %v41, %v45
    %vm48 = vcmask 64512
    %v50 = vsel %vm48, %v39, 0
    %vm52 = vcmask 1043456
    %v54 = vsel %vm52, %v40, 0
    %56 = vmatprep.subr.bf16.mxu0 0
    %57 = vmatpush1.bf16.msra.mxu0 0
    %58 = vmatprep.subr.bf16.mxu0 0
    %59 = vmatpush1.bf16.msra.mxu0 0
    %60 = vmatprep.subr.bf16.mxu0 0
    %61 = vmatpush1.bf16.msra.mxu0 0
    %62 = vmatprep.subr.bf16.mxu0 0
    %63 = vmatpush1.bf16.msra.mxu0 0
    %64 = vmatprep.subr.bf16.mxu0 0
    %65 = vmatpush1.bf16.msra.mxu0 0
    %66 = vmatprep.subr.bf16.mxu0 0
    %67 = vmatpush1.bf16.msra.mxu0 0
    %68 = vmatprep.subr.bf16.mxu0 0
    %69 = vmatpush1.bf16.msra.mxu0 0
    %70 = vmatprep.subr.bf16.mxu0 0
    %71 = vmatpush1.bf16.msra.mxu0 %v54
    %72 = vmatprep.subr.bf16.mxu0 0
    %73 = vmatpush2.bf16.msra.mxu0 0
    %74 = vmatprep.subr.bf16.mxu0 0
    %75 = vmatpush2.bf16.msra.mxu0 0
    %76 = vmatprep.subr.bf16.mxu0 0
    %77 = vmatpush2.bf16.msra.mxu0 0
    %78 = vmatprep.subr.bf16.mxu0 0
    %79 = vmatpush2.bf16.msra.mxu0 0
    %80 = vmatprep.subr.bf16.mxu0 0
    %81 = vmatpush2.bf16.msra.mxu0 0
    %82 = vmatprep.subr.bf16.mxu0 0
    %83 = vmatpush2.bf16.msra.mxu0 0
    %84 = vmatprep.subr.bf16.mxu0 0
    %85 = vmatpush2.bf16.msra.mxu0 0
    %86 = vmatprep.subr.bf16.mxu0 0
    %87 = vmatpush2.bf16.msra.mxu0 0
    %88 = vmatprep.mubr.bf16.mxu0 0
    %89 = vmatmul.mubr.bf16.gmra.mxu0 %v50
    %v90 = vpop.f32.mrf.mxu0
    %v91 = vadd.f32 %v46, %v90
    %v92 = vpop.f32.mrf.mxu0
    %v93 = vpop.f32.mrf.mxu0
    %v94 = vpop.f32.mrf.mxu0
    %95 = vdwg.mxu0
    %v96 = vmax.f32 %v91, 0.0
    %v97 = vpack.c.bf16 %v96, %v96
    %v98 = vld [vmem:[%s3] sm:$0xf]
    %v99 = vld [vmem:[%s3 + $0x4] sm:$0xf]
    %v100 = vld [vmem:[%s3 + $0x8] sm:$0xf]
    %v101 = vld [vmem:[%s3 + $0xc] sm:$0xf]
    %v102 = vld [vmem:[%s3 + $0x10] sm:$0xf]
    %v103 = vld [vmem:[%s3 + $0x14] sm:$0xf]
    %v104 = vld [vmem:[%s3 + $0x18] sm:$0xf]
    %v105 = vld [vmem:[%s3 + $0x1c] sm:$0xf]
    %v106 = vld [vmem:[%s3 + $0x20] sm:$0xf]
    %v107 = vld [vmem:[%s3 + $0x24] sm:$0xf]
    %v108 = vld [vmem:[%s3 + $0x28] sm:$0xf]
    %v109 = vld [vmem:[%s3 + $0x2c] sm:$0xf]
    %v110 = vld [vmem:[%s3 + $0x30] sm:$0xf]
    %v111 = vld [vmem:[%s3 + $0x34] sm:$0xf]
    %v112 = vld [vmem:[%s3 + $0x38] sm:$0xf]
    %v113 = vld [vmem:[%s3 + $0x3c] sm:$0xf]
    %v114 = vld [vmem:[%s4] sm:$0x1]
    %v116 = vlaneseq
    %v117 = vshrl.u32 %v116, 7
    %v118 = vsub.s32 0, %v117
    %v119 = vrot.slane %v114, %v118
    %v137 = vunpack.c.l.b16 %v98
    %v138 = vunpack.c.l.b16 %v99
    %v139 = vunpack.c.l.b16 %v100
    %v140 = vunpack.c.l.b16 %v101
    %v141 = vunpack.c.l.b16 %v102
    %v142 = vunpack.c.l.b16 %v103
    %v143 = vunpack.c.l.b16 %v104
    %v144 = vunpack.c.l.b16 %v105
    %v145 = vunpack.c.l.b16 %v106
    %v146 = vunpack.c.l.b16 %v107
    %v147 = vunpack.c.l.b16 %v108
    %v148 = vunpack.c.l.b16 %v109
    %v149 = vunpack.c.l.b16 %v110
    %v150 = vunpack.c.l.b16 %v111
    %v151 = vunpack.c.l.b16 %v112
    %v152 = vunpack.c.l.b16 %v113
    %v153 = vpack.c.b16 %v138, %v137
    %v154 = vpack.c.b16 %v140, %v139
    %v155 = vpack.c.b16 %v142, %v141
    %v156 = vpack.c.b16 %v144, %v143
    %v157 = vpack.c.b16 %v146, %v145
    %v158 = vpack.c.b16 %v148, %v147
    %v159 = vpack.c.b16 %v150, %v149
    %v160 = vpack.c.b16 %v152, %v151
    %169 = vmatprep.subr.bf16.mxu0 0
    %170 = vmatpush1.bf16.msra.mxu0 %v160
    %171 = vmatprep.subr.bf16.mxu0 0
    %172 = vmatpush1.bf16.msra.mxu0 %v159
    %173 = vmatprep.subr.bf16.mxu0 0
    %174 = vmatpush1.bf16.msra.mxu0 %v158
    %175 = vmatprep.subr.bf16.mxu0 0
    %176 = vmatpush1.bf16.msra.mxu0 %v157
    %177 = vmatprep.subr.bf16.mxu0 0
    %178 = vmatpush1.bf16.msra.mxu0 %v156
    %179 = vmatprep.subr.bf16.mxu0 0
    %180 = vmatpush1.bf16.msra.mxu0 %v155
    %181 = vmatprep.subr.bf16.mxu0 0
    %182 = vmatpush1.bf16.msra.mxu0 %v154
    %183 = vmatprep.subr.bf16.mxu0 0
    %184 = vmatpush1.bf16.msra.mxu0 %v153
    %185 = vmatprep.subr.bf16.mxu0 0
    %186 = vmatpush2.bf16.msra.mxu0 0
    %187 = vmatprep.subr.bf16.mxu0 0
    %188 = vmatpush2.bf16.msra.mxu0 0
    %189 = vmatprep.subr.bf16.mxu0 0
    %190 = vmatpush2.bf16.msra.mxu0 0
    %191 = vmatprep.subr.bf16.mxu0 0
    %192 = vmatpush2.bf16.msra.mxu0 0
    %193 = vmatprep.subr.bf16.mxu0 0
    %194 = vmatpush2.bf16.msra.mxu0 0
    %195 = vmatprep.subr.bf16.mxu0 0
    %196 = vmatpush2.bf16.msra.mxu0 0
    %197 = vmatprep.subr.bf16.mxu0 0
    %198 = vmatpush2.bf16.msra.mxu0 0
    %199 = vmatprep.subr.bf16.mxu0 0
    %200 = vmatpush2.bf16.msra.mxu0 0
    %201 = vmatprep.mubr.bf16.mxu0 0
    %202 = vmatmul.mubr.bf16.gmra.mxu0 %v97
    %v203 = vpop.f32.mrf.mxu0
    %v204 = vadd.f32 %v119, %v203
    %v205 = vpop.f32.mrf.mxu0
    %v206 = vpop.f32.mrf.mxu0
    %v207 = vpop.f32.mrf.mxu0
    %208 = vdwg.mxu0
    %v209 = vmax.f32 %v204, 0.0
    %v210 = vpack.c.bf16 %v209, %v209
    %v211 = vld [vmem:[%s5] sm:$0xf]
    %v212 = vld [vmem:[%s5 + $0x4] sm:$0xf]
    %v213 = vld [vmem:[%s5 + $0x8] sm:$0xf]
    %v214 = vld [vmem:[%s5 + $0xc] sm:$0xf]
    %v215 = vld [vmem:[%s5 + $0x10] sm:$0xf]
    %v216 = vld [vmem:[%s5 + $0x14] sm:$0xf]
    %v217 = vld [vmem:[%s5 + $0x18] sm:$0xf]
    %v218 = vld [vmem:[%s5 + $0x1c] sm:$0xf]
    %v219 = vld [vmem:[%s5 + $0x20] sm:$0xf]
    %v220 = vld [vmem:[%s5 + $0x24] sm:$0xf]
    %v221 = vld [vmem:[%s5 + $0x28] sm:$0xf]
    %v222 = vld [vmem:[%s5 + $0x2c] sm:$0xf]
    %v223 = vld [vmem:[%s5 + $0x30] sm:$0xf]
    %v224 = vld [vmem:[%s5 + $0x34] sm:$0xf]
    %v225 = vld [vmem:[%s5 + $0x38] sm:$0xf]
    %v226 = vld [vmem:[%s5 + $0x3c] sm:$0xf]
    %v227 = vld [vmem:[%s6] sm:$0x1]
    %v229 = vlaneseq
    %v230 = vshrl.u32 %v229, 7
    %v231 = vsub.s32 0, %v230
    %v232 = vrot.slane %v227, %v231
    %v250 = vunpack.c.l.b16 %v211
    %v251 = vunpack.c.l.b16 %v212
    %v252 = vunpack.c.l.b16 %v213
    %v253 = vunpack.c.l.b16 %v214
    %v254 = vunpack.c.l.b16 %v215
    %v255 = vunpack.c.l.b16 %v216
    %v256 = vunpack.c.l.b16 %v217
    %v257 = vunpack.c.l.b16 %v218
    %v258 = vunpack.c.l.b16 %v219
    %v259 = vunpack.c.l.b16 %v220
    %v260 = vunpack.c.l.b16 %v221
    %v261 = vunpack.c.l.b16 %v222
    %v262 = vunpack.c.l.b16 %v223
    %v263 = vunpack.c.l.b16 %v224
    %v264 = vunpack.c.l.b16 %v225
    %v265 = vunpack.c.l.b16 %v226
    %v266 = vpack.c.b16 %v251, %v250
    %v267 = vpack.c.b16 %v253, %v252
    %v268 = vpack.c.b16 %v255, %v254
    %v269 = vpack.c.b16 %v257, %v256
    %v270 = vpack.c.b16 %v259, %v258
    %v271 = vpack.c.b16 %v261, %v260
    %v272 = vpack.c.b16 %v263, %v262
    %v273 = vpack.c.b16 %v265, %v264
    %282 = vmatprep.subr.bf16.mxu0 0
    %283 = vmatpush1.bf16.msra.mxu0 %v273
    %284 = vmatprep.subr.bf16.mxu0 0
    %285 = vmatpush1.bf16.msra.mxu0 %v272
    %286 = vmatprep.subr.bf16.mxu0 0
    %287 = vmatpush1.bf16.msra.mxu0 %v271
    %288 = vmatprep.subr.bf16.mxu0 0
    %289 = vmatpush1.bf16.msra.mxu0 %v270
    %290 = vmatprep.subr.bf16.mxu0 0
    %291 = vmatpush1.bf16.msra.mxu0 %v269
    %292 = vmatprep.subr.bf16.mxu0 0
    %293 = vmatpush1.bf16.msra.mxu0 %v268
    %294 = vmatprep.subr.bf16.mxu0 0
    %295 = vmatpush1.bf16.msra.mxu0 %v267
    %296 = vmatprep.subr.bf16.mxu0 0
    %297 = vmatpush1.bf16.msra.mxu0 %v266
    %298 = vmatprep.subr.bf16.mxu0 0
    %299 = vmatpush2.bf16.msra.mxu0 0
    %300 = vmatprep.subr.bf16.mxu0 0
    %301 = vmatpush2.bf16.msra.mxu0 0
    %302 = vmatprep.subr.bf16.mxu0 0
    %303 = vmatpush2.bf16.msra.mxu0 0
    %304 = vmatprep.subr.bf16.mxu0 0
    %305 = vmatpush2.bf16.msra.mxu0 0
    %306 = vmatprep.subr.bf16.mxu0 0
    %307 = vmatpush2.bf16.msra.mxu0 0
    %308 = vmatprep.subr.bf16.mxu0 0
    %309 = vmatpush2.bf16.msra.mxu0 0
    %310 = vmatprep.subr.bf16.mxu0 0
    %311 = vmatpush2.bf16.msra.mxu0 0
    %312 = vmatprep.subr.bf16.mxu0 0
    %313 = vmatpush2.bf16.msra.mxu0 0
    %314 = vmatprep.mubr.bf16.mxu0 0
    %315 = vmatmul.mubr.bf16.gmra.mxu0 %v210
    %v316 = vpop.f32.mrf.mxu0
    %v317 = vadd.f32 %v232, %v316
    %v318 = vpop.f32.mrf.mxu0
    %v319 = vpop.f32.mrf.mxu0
    %v320 = vpop.f32.mrf.mxu0
    %321 = vdwg.mxu0
    %v322 = vmax.f32 %v317, 0.0
    %324 = vrot.lane.b32.xlu0 %v322, 127
    %v325 = vpop.permute.xlu0 %324
    %v327 = vadd.f32 %v322, %v325
    %328 = vrot.lane.b32.xlu0 %v322, 126
    %v329 = vpop.permute.xlu0 %328
    %v331 = vadd.f32 %v327, %v329
    %332 = vrot.lane.b32.xlu0 %v322, 125
    %v333 = vpop.permute.xlu0 %332
    %336 = vrot.lane.b32.xlu0 %v327, 126
    %v337 = vpop.permute.xlu0 %336
    %340 = vrot.lane.b32.xlu0 %v331, 127
    %v341 = vpop.permute.xlu0 %340
    %vm343 = vcmask 7168
    %v344 = vsel %vm343, %v333, %v337
    %vm345 = vcmask 15360
    %v346 = vsel %vm345, %v344, %v341
    %v347 = vadd.f32 %v317, %v346
    %vm348 = vcmask 23552
    %349 = vst.msk [vmem:[%s7] sm:$0xff] %vm348, %v347
    // Predicated region
    $region34: #{tpu_custom_call.1} parent=1 // pred_check
      _
    $region35: #{tpu_custom_call.1} parent=1 // pred_check_branch
      %351 = sbr.rel (0) target = $region37
    $region36: #{tpu_custom_call.1} parent=1 // pred_region
      _
    $region37: #{tpu_custom_call.1} parent=1 // pred_fallthru
      _
    // Predicated region
    $region38: #{tpu_custom_call.1} parent=1 // pred_check
      _
    $region39: #{tpu_custom_call.1} parent=1 // pred_check_branch
      %353 = sbr.rel (0) target = $region41
    $region40: #{tpu_custom_call.1} parent=1 // pred_region
      _
    $region41: #{tpu_custom_call.1} parent=1 // pred_fallthru
      _
    %354 = vsyncpa [#allocation3], 1

</llo_original>
